<compile_context>
chip_gen: v7x
topology: tpu7x:2x2x1
jax: 0.10.0
libtpu: 0.0.40
codegen_flags: <defaults>
</compile_context>

<pallas_src>
import functools

import jax
import jax.numpy as jnp
from jax.experimental import pallas as pl
from jax.experimental.pallas import tpu as pltpu


def _avg_embed_kernel(x_idx_smem, emb_row_ref, out_ref, acc_ref, *, inv_seq):
    # x_idx_smem : (seq*batch,) int32 in SMEM (scalar prefetch; only the
    #              index_maps read it, the body does not).
    # emb_row_ref: (1, 1, dim) gathered embedding row for grid point (b, s).
    # out_ref    : (1, 1, dim) output block for batch element b.
    # acc_ref    : (1, 1, dim) f32 VMEM accumulator, resident across the seq axis.
    del x_idx_smem
    s = pl.program_id(1)

    @pl.when(s == 0)
    def _init():
        acc_ref[...] = jnp.zeros_like(acc_ref)

    acc_ref[...] += emb_row_ref[...].astype(jnp.float32)

    @pl.when(s == pl.num_programs(1) - 1)
    def _finalize():
        out_ref[...] = (acc_ref[...] * inv_seq).astype(out_ref.dtype)


def avg_word_embeddings(x, embeddings):
    """x: (seq, batch) int32 indices; embeddings: (vocab, dim) float (frozen)."""
    seq, batch = x.shape
    vocab, dim = embeddings.shape

    # Indices go to SMEM via scalar prefetch; flatten so SMEM padding stays tiny.
    x_flat = x.reshape(seq * batch).astype(jnp.int32)
    # View the table as (vocab, 1, dim) so the gathered block's last two dims
    # equal the full array dims (layout-legal single-row gather).
    emb3 = embeddings.reshape(vocab, 1, dim)

    # Data-dependent row gather: block index along vocab = token id from SMEM.
    emb_spec = pl.BlockSpec(
        (1, 1, dim), lambda b, s, x_sm: (x_sm[s * batch + b], 0, 0))
    # One output block per batch element; constant across the seq (reduction) axis.
    out_spec = pl.BlockSpec((1, 1, dim), lambda b, s, x_sm: (b, 0, 0))

    out3 = pl.pallas_call(
        functools.partial(_avg_embed_kernel, inv_seq=1.0 / seq),
        out_shape=jax.ShapeDtypeStruct((batch, 1, dim), embeddings.dtype),
        grid_spec=pltpu.PrefetchScalarGridSpec(
            num_scalar_prefetch=1,
            grid=(batch, seq),          # reduction (seq) axis last
            in_specs=[emb_spec],
            out_specs=out_spec,
            scratch_shapes=[pltpu.VMEM((1, 1, dim), jnp.float32)],
        ),
        compiler_params=pltpu.CompilerParams(
            dimension_semantics=("parallel", "arbitrary")),
    )(x_flat, emb3)

    return out3.reshape(batch, dim)


if __name__ == "__main__":
    key = jax.random.PRNGKey(0)
    k_emb, k_idx = jax.random.split(key)

    vocab, dim = 32, 128
    seq, batch = 8, 2

    # Deterministic "pretrained" (frozen) embedding table.
    embeddings = jax.random.normal(k_emb, (vocab, dim), dtype=jnp.float32)
    # Token indices, shape (seq, batch) — mean is taken over the seq axis (axis=0).
    x = jax.random.randint(k_idx, (seq, batch), 0, vocab, dtype=jnp.int32)

    out = avg_word_embeddings(x, embeddings)
    out = jax.block_until_ready(out)

    # Pure-JAX reference: embedding lookup + mean over axis 0.
    ref = jnp.mean(embeddings[x], axis=0)
    assert out.shape == (batch, dim)
    assert jnp.allclose(out, ref, atol=1e-5, rtol=1e-5), "mismatch vs reference"

    print("KERNEL_OK")
</pallas_src>

<mosaic_0001>
module attributes {stable_mosaic.version = 11 : i64} {
  func.func @_avg_embed_kernel(%arg0: i32, %arg1: i32, %arg2: memref<16xi32, #tpu.memory_space<smem>>, %arg3: memref<1x1x128xf32, #tpu.memory_space<vmem>>, %arg4: memref<1x1x128xf32, #tpu.memory_space<vmem>>, %arg5: memref<1x1x128xf32, #tpu.memory_space<vmem>>) attributes {dimension_semantics = [#tpu.dimension_semantics<parallel>, #tpu.dimension_semantics<arbitrary>], iteration_bounds = array<i64: 2, 8>, scalar_prefetch = 1 : i64, scratch_operands = 1 : i64, tpu.core_type = #tpu.core_type<tc>, window_params = [{transform_indices = @transform_0, window_bounds = array<i64: 1, 1, 128>}, {transform_indices = @transform_1, window_bounds = array<i64: 1, 1, 128>}]} {
    %c0_i32 = arith.constant 0 : i32
    %0 = arith.cmpi eq, %arg1, %c0_i32 : i32
    %1 = arith.extui %0 : i1 to i32
    %c0_i32_0 = arith.constant 0 : i32
    %2 = arith.cmpi ne, %1, %c0_i32_0 : i32
    scf.if %2 {
      %cst = arith.constant 0.000000e+00 : f32
      %10 = vector.broadcast %cst : f32 to vector<1x1x128xf32>
      %c0_10 = arith.constant 0 : index
      %c0_11 = arith.constant 0 : index
      %c0_12 = arith.constant 0 : index
      %11 = vector.load %arg5[%c0_10, %c0_11, %c0_12] : memref<1x1x128xf32, #tpu.memory_space<vmem>>, vector<1x1x128xf32>
      tpu.vector_store %arg5[%c0_10, %c0_11, %c0_12], %10 {strides = array<i32>} : memref<1x1x128xf32, #tpu.memory_space<vmem>>, vector<1x1x128xf32>,
    } else {
    }
    %c0 = arith.constant 0 : index
    %c0_1 = arith.constant 0 : index
    %c0_2 = arith.constant 0 : index
    %3 = vector.load %arg5[%c0, %c0_1, %c0_2] : memref<1x1x128xf32, #tpu.memory_space<vmem>>, vector<1x1x128xf32>
    %c0_3 = arith.constant 0 : index
    %c0_4 = arith.constant 0 : index
    %c0_5 = arith.constant 0 : index
    %4 = vector.load %arg3[%c0_3, %c0_4, %c0_5] : memref<1x1x128xf32, #tpu.memory_space<vmem>>, vector<1x1x128xf32>
    %5 = arith.addf %3, %4 : vector<1x1x128xf32>
    %c0_6 = arith.constant 0 : index
    %c0_7 = arith.constant 0 : index
    %c0_8 = arith.constant 0 : index
    %6 = vector.load %arg5[%c0_6, %c0_7, %c0_8] : memref<1x1x128xf32, #tpu.memory_space<vmem>>, vector<1x1x128xf32>
    tpu.vector_store %arg5[%c0_6, %c0_7, %c0_8], %5 {strides = array<i32>} : memref<1x1x128xf32, #tpu.memory_space<vmem>>, vector<1x1x128xf32>,
    %c7_i32 = arith.constant 7 : i32
    %7 = arith.cmpi eq, %arg1, %c7_i32 : i32
    %8 = arith.extui %7 : i1 to i32
    %c0_i32_9 = arith.constant 0 : i32
    %9 = arith.cmpi ne, %8, %c0_i32_9 : i32
    scf.if %9 {
      %c0_10 = arith.constant 0 : index
      %c0_11 = arith.constant 0 : index
      %c0_12 = arith.constant 0 : index
      %10 = vector.load %arg5[%c0_10, %c0_11, %c0_12] : memref<1x1x128xf32, #tpu.memory_space<vmem>>, vector<1x1x128xf32>
      %cst = arith.constant 1.250000e-01 : f32
      %11 = vector.broadcast %cst : f32 to vector<1x1x128xf32>
      %12 = arith.mulf %10, %11 : vector<1x1x128xf32>
      %c0_13 = arith.constant 0 : index
      %c0_14 = arith.constant 0 : index
      %c0_15 = arith.constant 0 : index
      %13 = vector.load %arg4[%c0_13, %c0_14, %c0_15] : memref<1x1x128xf32, #tpu.memory_space<vmem>>, vector<1x1x128xf32>
      tpu.vector_store %arg4[%c0_13, %c0_14, %c0_15], %12 {strides = array<i32>} : memref<1x1x128xf32, #tpu.memory_space<vmem>>, vector<1x1x128xf32>,
    } else {
    }
    return
  }
  func.func @transform_0(%arg0: i32, %arg1: i32, %arg2: memref<16xi32, #tpu.memory_space<smem>>) -> (i32, i32, i32) {
    %c2_i32 = arith.constant 2 : i32
    %0 = arith.muli %arg1, %c2_i32 : i32
    %1 = arith.addi %0, %arg0 : i32
    %2 = arith.index_cast %1 : i32 to index
    %3 = memref.load %arg2[%2] : memref<16xi32, #tpu.memory_space<smem>>
    %c0_i32 = arith.constant 0 : i32
    %c0_i32_0 = arith.constant 0 : i32
    %c0_i32_1 = arith.constant 0 : i32
    return %3, %c0_i32, %c0_i32_0 : i32, i32, i32
  }
  func.func @transform_1(%arg0: i32, %arg1: i32, %arg2: memref<16xi32, #tpu.memory_space<smem>>) -> (i32, i32, i32) {
    %c0_i32 = arith.constant 0 : i32
    %c0_i32_0 = arith.constant 0 : i32
    %c0_i32_1 = arith.constant 0 : i32
    return %arg0, %c0_i32, %c0_i32_0 : i32, i32, i32
  }
}

</mosaic_0001>

<llo_original>
// kernel: tpu_custom_call.1
$region0: #{tpu_custom_call.1}
  #allocation0 [shape = 'u32[]', space=smem, size = 0x4, offset = 0x4, fixed_abs, tag = 'smem constant byte address 0x4 - core index']
  #allocation1 [shape = 'u32[144,128]{1,0:T(1,128)}', space=vmem, size = 0x12000, scoped, tag = 'internal scratch']
  #allocation2 [shape = 'f32[1,1,128]{2,1,0:T(1,128)}', space=vmem, size = 0x200, scoped, tag = 'scratch operand']
  #allocation3 [shape = 's32[1]{0}', space=sflag, size = 0x4, scoped, tag = 'scoped memory for tpu_custom_call.1']
  #allocation4 [shape = 'u8[512]{0}', space=smem, size = 0x200, scoped, tag = 'prefetched SMEM operand 0']
  %s0 = inlined_call_operand.hbm [shape: s32[16], index: 0, kind: input, shape index: {}]
  %s1 = inlined_call_operand.hbm [shape: f32[32,1,128], index: 1, kind: input, shape index: {}]
  %s2 = inlined_call_operand.hbm [shape: f32[2,1,128], index: 2, kind: output, shape index: {}]
  %s3 = sld [smem:[#allocation0]]
  $region49: #{tpu_custom_call.1} parent=0
    _
  %s5 = ssub.s32 1, %s3
  %s6 = scalar_select 0, %s5, %s3
  %8 = dma.hbm_to_smem %s0, 16, [#allocation4], [#allocation3]
  %9 = dma.done [#allocation3], 16
  %10 = sfence
  $region1: #{tpu_custom_call.1} parent=0
    #allocation5 [shape = 'u8[1024]{0}', space=vmem, size = 0x400, scoped, tag = 'input window, operand 1']
    #allocation6 [shape = 's32[2]{0}', space=sflag, size = 0x8, scoped, tag = 'scoped memory for tpu_custom_call.1']
    #allocation7 [shape = 's32[2]{0}', space=sflag, size = 0x8, scoped, tag = 'scoped memory for tpu_custom_call.1']
    #allocation8 [shape = 'u8[1024]{0}', space=vmem, size = 0x400, scoped, tag = 'output window, operand 0']
    %11 = vsyncpa [#allocation6], 0
    %s12 = scalar_lea.sflag [#allocation6], 1
    %13 = vsyncpa %s12, 0
    %14 = vsyncpa [#allocation7], 0
    %s15 = scalar_lea.sflag [#allocation7], 1
    %16 = vsyncpa %s15, 0
    loop: start=0, step=1, limit=18
    $region2: #{tpu_custom_call.1} parent=1 // loop_pre_header
      _
    $region3: #{tpu_custom_call.1} parent=1 // loop_header
      %s18 = sphi 0, %s22
      %p19 = scmp.ge.s32.totalorder %s18, 18
      %s25 = sphi 0, %s37
      %s26 = sphi 0, %s33
      %s27 = sphi 0, %s25
      %s28 = sphi 0, %s26
      %s29 = sphi 0, %s27
      %s30 = sphi 0, %s28
      %s46 = sphi 0, %s48
      %s49 = sphi 0, %s46
      %s50 = sphi 0, %s49
      %s66 = sphi 0, %s50
      %s72 = sphi 0, %s74
      %s75 = sphi 0, %s72
      %s76 = sphi 0, %s75
      %s92 = sphi 0, %s76
    $region4: #{tpu_custom_call.1} parent=1 // loop_header_branch
      %21 = sbr.rel (%p19) target = $region8
    $region5: #{tpu_custom_call.1} parent=1 // loop_body
      %s23 = ssub.s32 %s18, 1
      %s24 = ssub.s32 %s18, 2
      %s31 = sadd.s32 1, %s26
      %p32 = scmp.ge.s32.totalorder %s31, 8
      %s33 = scalar_select %p32, 0, %s31
      %s34 = sadd.s32 1, %s25
      %s35 = scalar_select %p32, %s34, %s25
      %p36 = scmp.ge.s32.totalorder %s35, 2
      %s37 = scalar_select %p36, 0, %s35
      %s38 = smul.u32 %s26, 2
      %s39 = sadd.s32 %s38, %s25
      %s40 = sld [smem:[#allocation4 + %s39]]
      %s41 = smul.u32 %s33, 2
      %s42 = sadd.s32 %s41, %s37
      %s43 = sld [smem:[#allocation4 + %s42]]
      %s44 = ssub.s32 %s40, %s43
      %p45 = scmp.eq.s32.totalorder %s44, 0
      %s47 = sadd.s32 %s46, 1
      %s48 = scalar_select %p45, %s46, %s47
      %p51 = pneg %p45
      %p52 = scmp.eq.s32.totalorder %s18, 15
      %p53 = por %p51, %p52
      %p54 = scmp.ne.s32.totalorder %s46, %s49
      %p55 = scmp.eq.s32.totalorder %s18, 0
      %p56 = por %p54, %p55
      %p57 = scmp.ne.s32.totalorder %s46, %s49
      %p58 = scmp.eq.s32.totalorder %s23, 15
      %p59 = por %p57, %p58
      %p60 = scmp.ne.s32.totalorder %s49, %s50
      %p61 = scmp.eq.s32.totalorder %s23, 0
      %p62 = por %p60, %p61
      %p63 = scmp.ne.s32.totalorder %s49, %s50
      %p64 = scmp.eq.s32.totalorder %s24, 15
      %p65 = por %p63, %p64
      %p67 = scmp.ne.s32.totalorder %s50, %s66
      %p68 = scmp.eq.s32.totalorder %s24, 0
      %p69 = por %p67, %p68
      %s70 = ssub.s32 %s25, %s37
      %p71 = scmp.eq.s32.totalorder %s70, 0
      %s73 = sadd.s32 %s72, 1
      %s74 = scalar_select %p71, %s72, %s73
      %p77 = pneg %p71
      %p78 = scmp.eq.s32.totalorder %s18, 15
      %p79 = por %p77, %p78
      %p80 = scmp.ne.s32.totalorder %s72, %s75
      %p81 = scmp.eq.s32.totalorder %s18, 0
      %p82 = por %p80, %p81
      %p83 = scmp.ne.s32.totalorder %s72, %s75
      %p84 = scmp.eq.s32.totalorder %s23, 15
      %p85 = por %p83, %p84
      %p86 = scmp.ne.s32.totalorder %s75, %s76
      %p87 = scmp.eq.s32.totalorder %s23, 0
      %p88 = por %p86, %p87
      %p89 = scmp.ne.s32.totalorder %s75, %s76
      %p90 = scmp.eq.s32.totalorder %s24, 15
      %p91 = por %p89, %p90
      %p93 = scmp.ne.s32.totalorder %s76, %s92
      %p94 = scmp.eq.s32.totalorder %s24, 0
      %p95 = por %p93, %p94
      %p96 = scmp.le.s32.totalorder 1, %s18
      %p97 = scmp.lt.s32.totalorder %s18, 17
      %p98 = pnand %p96, %p97
      %p99 = pneg %p98
      // Predicated region
      $region9: #{tpu_custom_call.1} parent=5 // pred_check
        _
      $region10: #{tpu_custom_call.1} parent=5 // pred_check_branch
        %101 = sbr.rel (%p98) target = $region12
      $region11: #{tpu_custom_call.1} parent=5 // pred_region
        %s102 = ssub.s32 %s18, 1
      $region12: #{tpu_custom_call.1} parent=5 // pred_fallthru
        _
      %p103 = scmp.lt.s32.totalorder %s18, 16
      // Predicated region
      $region13: #{tpu_custom_call.1} parent=5 // pred_check
        %p104 = pneg %p103
      $region14: #{tpu_custom_call.1} parent=5 // pred_check_branch
        %106 = sbr.rel (%p104) target = $region16
      $region15: #{tpu_custom_call.1} parent=5 // pred_region
        // Predicated region
        $region17: #{tpu_custom_call.1} parent=15 // pred_check
          %p107 = pneg %p56
        $region18: #{tpu_custom_call.1} parent=15 // pred_check_branch
          %109 = sbr.rel (%p107) target = $region20
        $region19: #{tpu_custom_call.1} parent=15 // pred_region
          %s110 = sand.u32 %s46, 1
          %s111 = scalar_lea.sflag [#allocation6], %s110
          %s112 = sand.u32 %s46, 1
          %s113 = scalar_lea.vmem [#allocation5], %s112
          %s114 = smul.u32 %s26, 2
          %s115 = sadd.s32 %s114, %s25
          %s116 = sld [smem:[#allocation4 + %s115]]
          %s118 = ssub.s32 16, 16
          %119 = vsyncadd %s111, %s118
          %s120 = smul.addr %s116, 16
          %s121 = scalar_lea.hbm %s1, %s120
          %s123 = sshll.u32 %s113, 4
          %s124 = int_to_ptr.vmem [resolvable:$true] %s123
          %126 = dma.hbm_to_vmem [thread:$0]  %s121, 16, %s124, %s111
        $region20: #{tpu_custom_call.1} parent=15 // pred_fallthru
          _
      $region16: #{tpu_custom_call.1} parent=5 // pred_fallthru
        _
      %p127 = scmp.le.s32.totalorder 1, %s18
      %p128 = scmp.lt.s32.totalorder %s18, 17
      %p129 = pnand %p127, %p128
      %p130 = pneg %p129
      // Predicated region
      $region21: #{tpu_custom_call.1} parent=5 // pred_check
        _
      $region22: #{tpu_custom_call.1} parent=5 // pred_check_branch
        %132 = sbr.rel (%p129) target = $region24
      $region23: #{tpu_custom_call.1} parent=5 // pred_region
        %s133 = ssub.s32 %s18, 1
        %s134 = sand.u32 %s49, 1
        %s135 = scalar_lea.sflag [#allocation6], %s134
        %s136 = sand.u32 %s49, 1
        %s137 = scalar_lea.vmem [#allocation5], %s136
        // Predicated region
        $region25: #{tpu_custom_call.1} parent=23 // pred_check
          %p138 = pneg %p62
        $region26: #{tpu_custom_call.1} parent=23 // pred_check_branch
          %140 = sbr.rel (%p138) target = $region28
        $region27: #{tpu_custom_call.1} parent=23 // pred_region
          %141 = dma.done %s135, 16
        $region28: #{tpu_custom_call.1} parent=23 // pred_fallthru
          _
        %s142 = sand.u32 %s49, 1
        %s143 = scalar_lea.sflag [#allocation6], %s142
        %s144 = sand.u32 %s49, 1
        %s145 = scalar_lea.vmem [#allocation5], %s144
        %p146 = pneg %p62
        %p147 = pneg %p59
        %p148 = pneg %p88
        %p149 = pneg %p85
        %s150 = sand.u32 %s75, 1
        %s151 = scalar_lea.sflag [#allocation7], %s150
        %s152 = sand.u32 %s75, 1
        %s153 = scalar_lea.vmem [#allocation8], %s152
        %s154 = smul.u32 %s28, 2
        %s155 = sadd.s32 %s154, %s27
        %s156 = sld [smem:[#allocation4 + %s155]]
        %p157 = scmp.eq.s32.totalorder %s28, 0
        // Predicated region
        $region29: #{tpu_custom_call.1} parent=23 // pred_check
          %p158 = pneg %p157
        $region30: #{tpu_custom_call.1} parent=23 // pred_check_branch
          %160 = sbr.rel (%p158) target = $region32
        $region31: #{tpu_custom_call.1} parent=23 // pred_region
          %161 = vst [vmem:[#allocation2] sm:$0x1] 0.0
        $region32: #{tpu_custom_call.1} parent=23 // pred_fallthru
          _
        %v162 = vld [vmem:[#allocation2] sm:$0x1]
        %v163 = vld [vmem:[%s137] sm:$0x1]
        %v164 = vadd.f32 %v162, %v163
        %165 = vst [vmem:[#allocation2] sm:$0x1] %v164
        %p166 = scmp.eq.s32.totalorder %s28, 7
        // Predicated region
        $region33: #{tpu_custom_call.1} parent=23 // pred_check
          %p167 = pneg %p166
        $region34: #{tpu_custom_call.1} parent=23 // pred_check_branch
          %169 = sbr.rel (%p167) target = $region36
        $region35: #{tpu_custom_call.1} parent=23 // pred_region
          %v170 = vld [vmem:[#allocation2] sm:$0x1]
          %v171 = vmul.f32 %v170, 0.125
          %172 = vst [vmem:[%s153] sm:$0x1] %v171
        $region36: #{tpu_custom_call.1} parent=23 // pred_fallthru
          _
        %s173 = sand.u32 %s75, 1
        %s174 = scalar_lea.sflag [#allocation7], %s173
        %s175 = sand.u32 %s75, 1
        %s176 = scalar_lea.vmem [#allocation8], %s175
        // Predicated region
        $region37: #{tpu_custom_call.1} parent=23 // pred_check
          %p177 = pneg %p85
        $region38: #{tpu_custom_call.1} parent=23 // pred_check_branch
          %179 = sbr.rel (%p177) target = $region40
        $region39: #{tpu_custom_call.1} parent=23 // pred_region
          %s181 = ssub.s32 16, 16
          %182 = vsyncadd %s174, %s181
          %s183 = smul.addr %s27, 16
          %s184 = scalar_lea.hbm %s2, %s183
          %s186 = sshll.u32 %s176, 4
          %s187 = int_to_ptr.vmem [resolvable:$true] %s186
          %189 = dma.vmem_to_hbm [thread:$0]  %s187, 16, %s184, %s174
        $region40: #{tpu_custom_call.1} parent=23 // pred_fallthru
          _
      $region24: #{tpu_custom_call.1} parent=5 // pred_fallthru
        _
      %p190 = scmp.le.s32.totalorder 2, %s18
      // Predicated region
      $region41: #{tpu_custom_call.1} parent=5 // pred_check
        %p191 = pneg %p190
      $region42: #{tpu_custom_call.1} parent=5 // pred_check_branch
        %193 = sbr.rel (%p191) target = $region44
      $region43: #{tpu_custom_call.1} parent=5 // pred_region
        %s194 = ssub.s32 %s18, 2
        // Predicated region
        $region45: #{tpu_custom_call.1} parent=43 // pred_check
          %p195 = pneg %p91
        $region46: #{tpu_custom_call.1} parent=43 // pred_check_branch
          %197 = sbr.rel (%p195) target = $region48
        $region47: #{tpu_custom_call.1} parent=43 // pred_region
          %s198 = sand.u32 %s76, 1
          %s199 = scalar_lea.sflag [#allocation7], %s198
          %s200 = sand.u32 %s76, 1
          %s201 = scalar_lea.vmem [#allocation8], %s200
          %202 = dma.done %s199, 16
        $region48: #{tpu_custom_call.1} parent=43 // pred_fallthru
          _
      $region44: #{tpu_custom_call.1} parent=5 // pred_fallthru
        _
    $region6: #{tpu_custom_call.1} parent=1 // loop_footer
      %s22 = sadd.s32 1, %s18
    $region7: #{tpu_custom_call.1} parent=1 // loop_footer_branch
      %17 = sbr.rel target = $region3
    $region8: #{tpu_custom_call.1} parent=1 // loop_exit
      _
    %203 = vsyncpa [#allocation6], 1
    %s204 = scalar_lea.sflag [#allocation6], 1
    %205 = vsyncpa %s204, 1
    %206 = vsyncpa [#allocation7], 1
    %s207 = scalar_lea.sflag [#allocation7], 1
    %208 = vsyncpa %s207, 1

</llo_original>
